<compile_context>
chip_gen: v6e
topology: v6e:2x2x1
jax: 0.10.0
libtpu: 0.0.40
codegen_flags: <defaults>
</compile_context>

<pallas_src>
import math
import jax
import jax.numpy as jnp
from jax.experimental import pallas as pl
from jax.experimental.pallas import tpu as pltpu


def _round_up(x, m):
    return ((x + m - 1) // m) * m


def _cdiv(a, b):
    return (a + b - 1) // b


# -----------------------------------------------------------------------------
# Kernel
# -----------------------------------------------------------------------------
def linear_kernel(x_ref, w_ref, b_ref, o_ref, acc_ref):
    """One (tm, tn) output tile; grid axis 2 is the reduction over K//tk blocks.

    x_ref: (tm, tk) bf16, w_ref: (tk, tn) bf16, b_ref: (1, tn) f32,
    o_ref: (tm, tn) out_dtype, acc_ref: (tm, tn) f32 VMEM scratch.
    """
    k = pl.program_id(2)

    # bf16 x bf16 -> f32 on the MXU.
    prod = jnp.dot(x_ref[...], w_ref[...], preferred_element_type=jnp.float32)

    # Skip the zero-init round trip: first k step writes, later steps add.
    @pl.when(k == 0)
    def _():
        acc_ref[...] = prod

    @pl.when(k > 0)
    def _():
        acc_ref[...] += prod

    # Bias add + downcast only once, on the final k step.
    @pl.when(k == pl.num_programs(2) - 1)
    def _():
        o_ref[...] = (acc_ref[...] + b_ref[...]).astype(o_ref.dtype)


# -----------------------------------------------------------------------------
# Tile selection / VMEM budgeting
# -----------------------------------------------------------------------------
_TM_REF = 512  # reference M tile used when budgeting the K/N tiles


def _vmem_budget_bytes():
    """Per-kernel VMEM budget derived from the chip (v5e/v6e: 128 MiB physical,
    v7x: 64 MiB). Use at most half of physical, capped at 64 MiB."""
    cap = 128 * 1024 * 1024
    try:
        cap = int(pltpu.get_tpu_info().vmem_capacity_bytes)
    except Exception:
        pass
    return min(cap // 2, 64 * 1024 * 1024)


def _footprint_bytes(tm, tn, tk, x_item, w_item, out_item):
    return (2 * tm * tk * x_item        # x tile, double-buffered
            + 2 * tk * tn * w_item      # weight tile, double-buffered
            + 2 * tn * 4                # bias tile (f32), double-buffered
            + tm * tn * 4               # f32 accumulator scratch
            + 2 * tm * tn * out_item)   # output tile, double-buffered


def _halve_128(t):
    return max(128, ((t // 2) // 128) * 128)


def _pick_tn_tk(K, N, budget, x_item, w_item, out_item):
    Nr = _round_up(N, 128)
    Kr = _round_up(K, 128)
    # N tile: large, but keep >= 2 j-blocks where possible so both v7x
    # TensorCores get work along the "parallel" j axis.
    tn = min(512, Nr)
    while tn > 128 and _cdiv(Nr, tn) < 2:
        tn = _halve_128(tn)
    # K tile: deep (amortizes per-grid-step overhead, raises arithmetic
    # intensity per step).
    tk = min(1024, Kr)
    # Shrink K then N tile if we would exceed the per-generation VMEM budget.
    while _footprint_bytes(_TM_REF, tn, tk, x_item, w_item, out_item) > budget and tk > 128:
        tk = _halve_128(tk)
    while _footprint_bytes(_TM_REF, tn, tk, x_item, w_item, out_item) > budget and tn > 128:
        tn = _halve_128(tn)
    return tn, tk


def _pick_tm(B):
    # bf16 activations: round the batch tile up to 16 (sublane packing).
    Bp = _round_up(max(B, 1), 16)
    if Bp <= 512:
        return Bp  # single i block, minimal zero-row padding
    # Large batch: minimize M over-padding; ties -> bigger tile (the weight is
    # re-streamed ceil(Mp/tm) times, so prefer a larger tm).
    return min((512, 256, 128), key=lambda t: (_round_up(B, t), -t))


# -----------------------------------------------------------------------------
# Forward
# -----------------------------------------------------------------------------
def _linear_forward(x, w_pad, b_pad, N, tn, tk, budget):
    """x: (B, K) float; w_pad: (Kp, Np) bf16; b_pad: (1, Np) f32 -> (B, N)."""
    B, K = x.shape
    Kp, Np = w_pad.shape
    out_dtype = x.dtype
    out_item = jnp.dtype(out_dtype).itemsize

    tm = _pick_tm(B)
    Mp = _round_up(B, tm)

    xb = x.astype(jnp.bfloat16)
    if Mp != B or Kp != K:
        xb = jnp.pad(xb, ((0, Mp - B), (0, Kp - K)))

    grid = (Mp // tm, Np // tn, Kp // tk)

    footprint = _footprint_bytes(tm, tn, tk, 2, 2, out_item)
    vmem_limit = int(min(budget, max(2 * footprint, 32 * 1024 * 1024)))

    # Under the (i, j, k) grid, x is re-read grid[1] times and the weight
    # grid[0] times.
    cost = pl.CostEstimate(
        flops=2 * Mp * Np * Kp,
        transcendentals=0,
        bytes_accessed=(Mp * Kp * 2 * grid[1] + Kp * Np * 2 * grid[0]
                        + Np * 4 + Mp * Np * out_item),
    )

    out = pl.pallas_call(
        linear_kernel,
        out_shape=jax.ShapeDtypeStruct((Mp, Np), out_dtype),
        grid_spec=pltpu.PrefetchScalarGridSpec(
            num_scalar_prefetch=0,
            grid=grid,
            in_specs=[
                pl.BlockSpec((tm, tk), lambda i, j, k: (i, k)),   # x tile
                pl.BlockSpec((tk, tn), lambda i, j, k: (k, j)),   # weight tile
                pl.BlockSpec((1, tn), lambda i, j, k: (0, j)),    # bias tile
            ],
            out_specs=pl.BlockSpec((tm, tn), lambda i, j, k: (i, j)),
            scratch_shapes=[pltpu.VMEM((tm, tn), jnp.float32)],
        ),
        compiler_params=pltpu.CompilerParams(
            dimension_semantics=("parallel", "parallel", "arbitrary"),
            vmem_limit_bytes=vmem_limit),
        cost_estimate=cost,
    )(xb, w_pad, b_pad)

    if Mp != B or Np != N:
        out = out[:B, :N]
    return out


class LinearWrapperPallas:
    """JAX/Pallas equivalent of the PyTorch LinearWrapper.

    Weights are stored in bf16, pre-padded once to the kernel's (Kp, Np) tile
    grid; the matmul runs on the MXU bf16 path with an f32 accumulator and an
    f32 bias epilogue.
    """

    def __init__(self, input_shape, out_features, bias=True, key=None):
        if isinstance(input_shape, int):
            self.input_shape = input_shape
            self.in_features = input_shape
        else:
            self.input_shape = tuple(input_shape)
            self.in_features = math.prod(self.input_shape[1:])
        self.out_features = out_features
        self.use_bias = bias
        self.output_shape = (-1, out_features)

        if key is None:
            key = jax.random.PRNGKey(0)
        kw, kb = jax.random.split(key)
        bound = 1.0 / math.sqrt(self.in_features)

        K, N = self.in_features, self.out_features
        # nn.Linear default init (uniform ±1/sqrt(fan_in)) in f32, then cast to
        # bf16 storage.
        w = jax.random.uniform(kw, (K, N), minval=-bound, maxval=bound,
                               dtype=jnp.float32)
        b = (jax.random.uniform(kb, (N,), minval=-bound, maxval=bound,
                                dtype=jnp.float32)
             if bias else jnp.zeros((N,), jnp.float32))

        # Tile selection + ONE-TIME padding of the parameters (per-call padding
        # would re-stream the whole (K, N) weight through HBM every forward).
        self._budget = _vmem_budget_bytes()
        self._tn, self._tk = _pick_tn_tk(K, N, self._budget, 2, 2, 4)
        Kp = _round_up(K, self._tk)
        Np = _round_up(N, self._tn)
        self.weight_padded = jnp.pad(
            w.astype(jnp.bfloat16), ((0, Kp - K), (0, Np - N)))
        self.bias_padded = jnp.pad(b, (0, Np - N)).reshape(1, Np)
        # TODO(synk): optional fp8 (v7x) / int8+per-column-scale (v5e/v6e)
        # weight storage for weight-bandwidth-bound shapes.

    def __call__(self, x):
        lead = x.shape[:-1]
        x2 = x.reshape(-1, self.in_features)
        out = _linear_forward(x2, self.weight_padded, self.bias_padded,
                              self.out_features, self._tn, self._tk,
                              self._budget)
        return out.reshape(*lead, self.out_features)


if __name__ == "__main__":
    key = jax.random.PRNGKey(0)
    k_in, k_p1, k_p2 = jax.random.split(key, 3)

    # input_shape=(2, 4, 16) -> in_features = 4*16 = 64; out_features = 32.
    input_shape = (2, 4, 16)
    out_features = 32
    batch = 8
    in_features = math.prod(input_shape[1:])

    model = LinearWrapperPallas(input_shape, out_features, bias=True, key=k_p1)

    # forward() in PyTorch applies nn.Linear to the last dim; input here is
    # already flattened to (batch, in_features).
    x = jax.random.normal(k_in, (batch, in_features), dtype=jnp.float32)

    out = jax.block_until_ready(model(x))
    assert out.shape == (batch, out_features)

    # Reference: same bf16-input / f32-accumulate math as the kernel.
    w_ref = model.weight_padded[:in_features, :out_features]
    b_ref = model.bias_padded[0, :out_features]
    ref = jnp.dot(x.astype(jnp.bfloat16), w_ref,
                  preferred_element_type=jnp.float32) + b_ref
    assert jnp.allclose(out, ref, atol=1e-3, rtol=1e-3)

    # No-bias path (same kernel / grid spec; bias is a zero row).
    model_nb = LinearWrapperPallas(input_shape, out_features, bias=False,
                                   key=k_p2)
    out_nb = jax.block_until_ready(model_nb(x))
    ref_nb = jnp.dot(x.astype(jnp.bfloat16),
                     model_nb.weight_padded[:in_features, :out_features],
                     preferred_element_type=jnp.float32)
    assert out_nb.shape == (batch, out_features)
    assert jnp.allclose(out_nb, ref_nb, atol=1e-3, rtol=1e-3)

    print("KERNEL_OK")
</pallas_src>

<mosaic_0001>
module attributes {stable_mosaic.version = 11 : i64} {
  func.func @linear_kernel(%arg0: i32, %arg1: i32, %arg2: i32, %arg3: memref<16x128xbf16, #tpu.memory_space<vmem>>, %arg4: memref<128x128xbf16, #tpu.memory_space<vmem>>, %arg5: memref<1x128xf32, #tpu.memory_space<vmem>>, %arg6: memref<16x128xf32, #tpu.memory_space<vmem>>, %arg7: memref<16x128xf32, #tpu.memory_space<vmem>>) attributes {dimension_semantics = [#tpu.dimension_semantics<parallel>, #tpu.dimension_semantics<parallel>, #tpu.dimension_semantics<arbitrary>], iteration_bounds = array<i64: 1, 1, 1>, scalar_prefetch = 0 : i64, scratch_operands = 1 : i64, tpu.core_type = #tpu.core_type<tc>, window_params = [{transform_indices = @transform_0, window_bounds = array<i64: 16, 128>}, {transform_indices = @transform_1, window_bounds = array<i64: 128, 128>}, {transform_indices = @transform_2, window_bounds = array<i64: 1, 128>}, {transform_indices = @transform_3, window_bounds = array<i64: 16, 128>}]} {
    %c0 = arith.constant 0 : index
    %c0_0 = arith.constant 0 : index
    %0 = vector.load %arg3[%c0, %c0_0] : memref<16x128xbf16, #tpu.memory_space<vmem>>, vector<16x128xbf16>
    %c0_1 = arith.constant 0 : index
    %c0_2 = arith.constant 0 : index
    %1 = vector.load %arg4[%c0_1, %c0_2] : memref<128x128xbf16, #tpu.memory_space<vmem>>, vector<128x128xbf16>
    %cst = arith.constant dense<0.000000e+00> : vector<16x128xf32>
    %2 = tpu.matmul %0, %1, %cst {dimension_numbers = #tpu.dot_dimension_numbers<[1], [0], [0], [1], [0, 0, 1, 1], [], []>} : vector<16x128xbf16>, vector<128x128xbf16>, vector<16x128xf32> -> vector<16x128xf32>
    %c0_i32 = arith.constant 0 : i32
    %3 = arith.cmpi eq, %arg2, %c0_i32 : i32
    %4 = arith.extui %3 : i1 to i32
    %c0_i32_3 = arith.constant 0 : i32
    %5 = arith.cmpi ne, %4, %c0_i32_3 : i32
    scf.if %5 {
      %c0_8 = arith.constant 0 : index
      %c0_9 = arith.constant 0 : index
      %12 = vector.load %arg7[%c0_8, %c0_9] : memref<16x128xf32, #tpu.memory_space<vmem>>, vector<16x128xf32>
      tpu.vector_store %arg7[%c0_8, %c0_9], %2 {strides = array<i32>} : memref<16x128xf32, #tpu.memory_space<vmem>>, vector<16x128xf32>,
    } else {
    }
    %c0_i32_4 = arith.constant 0 : i32
    %6 = arith.cmpi sgt, %arg2, %c0_i32_4 : i32
    %7 = arith.extui %6 : i1 to i32
    %c0_i32_5 = arith.constant 0 : i32
    %8 = arith.cmpi ne, %7, %c0_i32_5 : i32
    scf.if %8 {
      %c0_8 = arith.constant 0 : index
      %c0_9 = arith.constant 0 : index
      %12 = vector.load %arg7[%c0_8, %c0_9] : memref<16x128xf32, #tpu.memory_space<vmem>>, vector<16x128xf32>
      %13 = arith.addf %12, %2 : vector<16x128xf32>
      %c0_10 = arith.constant 0 : index
      %c0_11 = arith.constant 0 : index
      %14 = vector.load %arg7[%c0_10, %c0_11] : memref<16x128xf32, #tpu.memory_space<vmem>>, vector<16x128xf32>
      tpu.vector_store %arg7[%c0_10, %c0_11], %13 {strides = array<i32>} : memref<16x128xf32, #tpu.memory_space<vmem>>, vector<16x128xf32>,
    } else {
    }
    %c0_i32_6 = arith.constant 0 : i32
    %9 = arith.cmpi eq, %arg2, %c0_i32_6 : i32
    %10 = arith.extui %9 : i1 to i32
    %c0_i32_7 = arith.constant 0 : i32
    %11 = arith.cmpi ne, %10, %c0_i32_7 : i32
    scf.if %11 {
      %c0_8 = arith.constant 0 : index
      %c0_9 = arith.constant 0 : index
      %12 = vector.load %arg7[%c0_8, %c0_9] : memref<16x128xf32, #tpu.memory_space<vmem>>, vector<16x128xf32>
      %c0_10 = arith.constant 0 : index
      %c0_11 = arith.constant 0 : index
      %13 = vector.load %arg5[%c0_10, %c0_11] : memref<1x128xf32, #tpu.memory_space<vmem>>, vector<1x128xf32>
      %14 = vector.broadcast %13 : vector<1x128xf32> to vector<16x128xf32>
      %15 = arith.addf %12, %14 : vector<16x128xf32>
      %c0_12 = arith.constant 0 : index
      %c0_13 = arith.constant 0 : index
      %16 = vector.load %arg6[%c0_12, %c0_13] : memref<16x128xf32, #tpu.memory_space<vmem>>, vector<16x128xf32>
      tpu.vector_store %arg6[%c0_12, %c0_13], %15 {strides = array<i32>} : memref<16x128xf32, #tpu.memory_space<vmem>>, vector<16x128xf32>,
    } else {
    }
    return
  }
  func.func @transform_0(%arg0: i32, %arg1: i32, %arg2: i32) -> (i32, i32) {
    %c0_i32 = arith.constant 0 : i32
    return %arg0, %arg2 : i32, i32
  }
  func.func @transform_1(%arg0: i32, %arg1: i32, %arg2: i32) -> (i32, i32) {
    %c0_i32 = arith.constant 0 : i32
    return %arg2, %arg1 : i32, i32
  }
  func.func @transform_2(%arg0: i32, %arg1: i32, %arg2: i32) -> (i32, i32) {
    %c0_i32 = arith.constant 0 : i32
    %c0_i32_0 = arith.constant 0 : i32
    return %c0_i32, %arg1 : i32, i32
  }
  func.func @transform_3(%arg0: i32, %arg1: i32, %arg2: i32) -> (i32, i32) {
    %c0_i32 = arith.constant 0 : i32
    return %arg0, %arg1 : i32, i32
  }
}

</mosaic_0001>

<llo_original>
// kernel: tpu_custom_call.1
$region0: #{tpu_custom_call.1}
  #allocation0 [shape = 'u32[]', space=smem, size = 0x4, offset = 0x4, fixed_abs, tag = 'smem constant byte address 0x4 - core index']
  #allocation1 [shape = 'u32[144,128]{1,0:T(1,128)}', space=vmem, size = 0x12000, scoped, tag = 'internal scratch']
  #allocation2 [shape = 'f32[16,128]{1,0:T(8,128)}', space=vmem, size = 0x2000, scoped, tag = 'scratch operand']
  %s0 = inlined_call_operand.hbm [shape: bf16[16,128], index: 0, kind: input, shape index: {}]
  %s1 = inlined_call_operand.hbm [shape: bf16[128,128], index: 1, kind: input, shape index: {}]
  %s2 = inlined_call_operand.vmem [shape: f32[1,128], index: 2, kind: input, shape index: {}]
  %s3 = inlined_call_operand.hbm [shape: f32[16,128], index: 3, kind: output, shape index: {}]
  %s4 = sld [smem:[#allocation0]]
  $region42: #{tpu_custom_call.1} parent=0
    _
  %s6 = ssub.s32 1, %s4
  %s7 = scalar_select 0, %s6, %s4
  $region1: #{tpu_custom_call.1} parent=0
    #allocation3 [shape = 'u8[4096]{0}', space=vmem, size = 0x1000, scoped, tag = 'input window, operand 0, single buffered']
    #allocation4 [shape = 's32[1]{0}', space=sflag, size = 0x4, scoped, tag = 'scoped memory for tpu_custom_call.1']
    #allocation5 [shape = 's32[1]{0}', space=sflag, size = 0x4, scoped, tag = 'scoped memory for tpu_custom_call.1']
    #allocation6 [shape = 'u8[32768]{0}', space=vmem, size = 0x8000, scoped, tag = 'input window, operand 1, single buffered']
    #allocation7 [shape = 's32[1]{0}', space=sflag, size = 0x4, scoped, tag = 'scoped memory for tpu_custom_call.1']
    #allocation8 [shape = 'u8[8192]{0}', space=vmem, size = 0x2000, scoped, tag = 'output window, operand 0, single buffered']
    %8 = vsyncpa [#allocation4], 0
    %9 = vsyncpa [#allocation7], 0
    %10 = vsyncpa [#allocation5], 0
    // Predicated region
    $region2: #{tpu_custom_call.1} parent=1 // pred_check
      _
    $region3: #{tpu_custom_call.1} parent=1 // pred_check_branch
      %12 = sbr.rel (0) target = $region5
    $region4: #{tpu_custom_call.1} parent=1 // pred_region
      %s14 = ssub.s32 128, 128
      %15 = vsyncadd [#allocation4], %s14
      %s16 = sshll.u32 [#allocation3], 4
      %s17 = int_to_ptr.vmem [resolvable:$true] %s16
      %22 = dma.hbm_to_vmem [thread:$0]  %s0, 128, %s17, [#allocation4], 64, 64, 4
    $region5: #{tpu_custom_call.1} parent=1 // pred_fallthru
      _
    // Predicated region
    $region6: #{tpu_custom_call.1} parent=1 // pred_check
      _
    $region7: #{tpu_custom_call.1} parent=1 // pred_check_branch
      %24 = sbr.rel (0) target = $region9
    $region8: #{tpu_custom_call.1} parent=1 // pred_region
      %s26 = ssub.s32 1024, 1024
      %27 = vsyncadd [#allocation7], %s26
      %s28 = sshll.u32 [#allocation6], 4
      %s29 = int_to_ptr.vmem [resolvable:$true] %s28
      %34 = dma.hbm_to_vmem [thread:$0]  %s1, 1024, %s29, [#allocation7], 64, 64, 4
    $region9: #{tpu_custom_call.1} parent=1 // pred_fallthru
      _
    // Predicated region
    $region10: #{tpu_custom_call.1} parent=1 // pred_check
      _
    $region11: #{tpu_custom_call.1} parent=1 // pred_check_branch
      %36 = sbr.rel (0) target = $region13
    $region12: #{tpu_custom_call.1} parent=1 // pred_region
      _
    $region13: #{tpu_custom_call.1} parent=1 // pred_fallthru
      _
    // Predicated region
    $region14: #{tpu_custom_call.1} parent=1 // pred_check
      _
    $region15: #{tpu_custom_call.1} parent=1 // pred_check_branch
      %38 = sbr.rel (0) target = $region17
    $region16: #{tpu_custom_call.1} parent=1 // pred_region
      %39 = dma.done [#allocation4], 128
    $region17: #{tpu_custom_call.1} parent=1 // pred_fallthru
      _
    // Predicated region
    $region18: #{tpu_custom_call.1} parent=1 // pred_check
      _
    $region19: #{tpu_custom_call.1} parent=1 // pred_check_branch
      %41 = sbr.rel (0) target = $region21
    $region20: #{tpu_custom_call.1} parent=1 // pred_region
      %42 = dma.done [#allocation7], 1024
    $region21: #{tpu_custom_call.1} parent=1 // pred_fallthru
      _
    %v44 = vld [vmem:[#allocation3] sm:$0xf]
    %v45 = vld [vmem:[#allocation3 + $0x4] sm:$0xf]
    %v46 = vld [vmem:[#allocation6] sm:$0xf]
    %v47 = vld [vmem:[#allocation6 + $0x4] sm:$0xf]
    %v48 = vld [vmem:[#allocation6 + $0x8] sm:$0xf]
    %v49 = vld [vmem:[#allocation6 + $0xc] sm:$0xf]
    %v50 = vld [vmem:[#allocation6 + $0x10] sm:$0xf]
    %v51 = vld [vmem:[#allocation6 + $0x14] sm:$0xf]
    %v52 = vld [vmem:[#allocation6 + $0x18] sm:$0xf]
    %v53 = vld [vmem:[#allocation6 + $0x1c] sm:$0xf]
    %v54 = vld [vmem:[#allocation6 + $0x20] sm:$0xf]
    %v55 = vld [vmem:[#allocation6 + $0x24] sm:$0xf]
    %v56 = vld [vmem:[#allocation6 + $0x28] sm:$0xf]
    %v57 = vld [vmem:[#allocation6 + $0x2c] sm:$0xf]
    %v58 = vld [vmem:[#allocation6 + $0x30] sm:$0xf]
    %v59 = vld [vmem:[#allocation6 + $0x34] sm:$0xf]
    %v60 = vld [vmem:[#allocation6 + $0x38] sm:$0xf]
    %v61 = vld [vmem:[#allocation6 + $0x3c] sm:$0xf]
    %v64 = vunpack.c.l.b16 %v44
    %v65 = vunpack.c.l.b16 %v45
    %v66 = vpack.c.b16 %v65, %v64
    %v84 = vunpack.c.l.b16 %v46
    %v85 = vunpack.c.l.b16 %v47
    %v86 = vunpack.c.l.b16 %v48
    %v87 = vunpack.c.l.b16 %v49
    %v88 = vunpack.c.l.b16 %v50
    %v89 = vunpack.c.l.b16 %v51
    %v90 = vunpack.c.l.b16 %v52
    %v91 = vunpack.c.l.b16 %v53
    %v92 = vunpack.c.l.b16 %v54
    %v93 = vunpack.c.l.b16 %v55
    %v94 = vunpack.c.l.b16 %v56
    %v95 = vunpack.c.l.b16 %v57
    %v96 = vunpack.c.l.b16 %v58
    %v97 = vunpack.c.l.b16 %v59
    %v98 = vunpack.c.l.b16 %v60
    %v99 = vunpack.c.l.b16 %v61
    %v100 = vpack.c.b16 %v85, %v84
    %v101 = vpack.c.b16 %v87, %v86
    %v102 = vpack.c.b16 %v89, %v88
    %v103 = vpack.c.b16 %v91, %v90
    %v104 = vpack.c.b16 %v93, %v92
    %v105 = vpack.c.b16 %v95, %v94
    %v106 = vpack.c.b16 %v97, %v96
    %v107 = vpack.c.b16 %v99, %v98
    %116 = vmatprep.subr.bf16.mxu0 0
    %117 = vmatpush1.bf16.msra.mxu0 %v107
    %118 = vmatprep.subr.bf16.mxu0 0
    %119 = vmatpush1.bf16.msra.mxu0 %v106
    %120 = vmatprep.subr.bf16.mxu0 0
    %121 = vmatpush1.bf16.msra.mxu0 %v105
    %122 = vmatprep.subr.bf16.mxu0 0
    %123 = vmatpush1.bf16.msra.mxu0 %v104
    %124 = vmatprep.subr.bf16.mxu0 0
    %125 = vmatpush1.bf16.msra.mxu0 %v103
    %126 = vmatprep.subr.bf16.mxu0 0
    %127 = vmatpush1.bf16.msra.mxu0 %v102
    %128 = vmatprep.subr.bf16.mxu0 0
    %129 = vmatpush1.bf16.msra.mxu0 %v101
    %130 = vmatprep.subr.bf16.mxu0 0
    %131 = vmatpush1.bf16.msra.mxu0 %v100
    %132 = vmatprep.subr.bf16.mxu0 0
    %133 = vmatpush2.bf16.msra.mxu0 0
    %134 = vmatprep.subr.bf16.mxu0 0
    %135 = vmatpush2.bf16.msra.mxu0 0
    %136 = vmatprep.subr.bf16.mxu0 0
    %137 = vmatpush2.bf16.msra.mxu0 0
    %138 = vmatprep.subr.bf16.mxu0 0
    %139 = vmatpush2.bf16.msra.mxu0 0
    %140 = vmatprep.subr.bf16.mxu0 0
    %141 = vmatpush2.bf16.msra.mxu0 0
    %142 = vmatprep.subr.bf16.mxu0 0
    %143 = vmatpush2.bf16.msra.mxu0 0
    %144 = vmatprep.subr.bf16.mxu0 0
    %145 = vmatpush2.bf16.msra.mxu0 0
    %146 = vmatprep.subr.bf16.mxu0 0
    %147 = vmatpush2.bf16.msra.mxu0 0
    %148 = vmatprep.mubr.bf16.mxu0 0
    %149 = vmatmul.mubr.bf16.gmra.mxu0 %v66
    %v150 = vpop.f32.mrf.mxu0
    %v151 = vadd.f32 0.0, %v150
    %v152 = vpop.f32.mrf.mxu0
    %v153 = vpop.f32.mrf.mxu0
    %v154 = vadd.f32 0.0, %v153
    %v155 = vpop.f32.mrf.mxu0
    %156 = vdwg.mxu0
    %p157 = scmp.eq.s32.totalorder 0, 0
    // Predicated region
    $region22: #{tpu_custom_call.1} parent=1 // pred_check
      %p158 = pneg %p157
    $region23: #{tpu_custom_call.1} parent=1 // pred_check_branch
      %160 = sbr.rel (%p158) target = $region25
    $region24: #{tpu_custom_call.1} parent=1 // pred_region
      %161 = vst [vmem:[#allocation2] sm:$0xff] %v151
      %162 = vst [vmem:[#allocation2 + $0x8] sm:$0xff] %v154
    $region25: #{tpu_custom_call.1} parent=1 // pred_fallthru
      _
    %p163 = scmp.gt.s32.totalorder 0, 0
    // Predicated region
    $region26: #{tpu_custom_call.1} parent=1 // pred_check
      %p164 = pneg %p163
    $region27: #{tpu_custom_call.1} parent=1 // pred_check_branch
      %166 = sbr.rel (%p164) target = $region29
    $region28: #{tpu_custom_call.1} parent=1 // pred_region
      %v167 = vld [vmem:[#allocation2] sm:$0xff]
      %v168 = vld [vmem:[#allocation2 + $0x8] sm:$0xff]
      %v169 = vadd.f32 %v167, %v151
      %v170 = vadd.f32 %v168, %v154
      %171 = vst [vmem:[#allocation2] sm:$0xff] %v169
      %172 = vst [vmem:[#allocation2 + $0x8] sm:$0xff] %v170
    $region29: #{tpu_custom_call.1} parent=1 // pred_fallthru
      _
    // Predicated region
    $region30: #{tpu_custom_call.1} parent=1 // pred_check
      %p173 = pneg %p157
    $region31: #{tpu_custom_call.1} parent=1 // pred_check_branch
      %175 = sbr.rel (%p173) target = $region33
    $region32: #{tpu_custom_call.1} parent=1 // pred_region
      %v176 = vld [vmem:[#allocation2] sm:$0xff]
      %v177 = vld [vmem:[#allocation2 + $0x8] sm:$0xff]
      %v178 = vld [vmem:[%s2] sm:$0x1]
      %v180 = vlaneseq
      %v181 = vshrl.u32 %v180, 7
      %v182 = vsub.s32 0, %v181
      %v183 = vrot.slane %v178, %v182
      %v185 = vadd.f32 %v176, %v183
      %v186 = vadd.f32 %v177, %v183
      %187 = vst [vmem:[#allocation8] sm:$0xff] %v185
      %188 = vst [vmem:[#allocation8 + $0x8] sm:$0xff] %v186
    $region33: #{tpu_custom_call.1} parent=1 // pred_fallthru
      _
    // Predicated region
    $region34: #{tpu_custom_call.1} parent=1 // pred_check
      _
    $region35: #{tpu_custom_call.1} parent=1 // pred_check_branch
      %190 = sbr.rel (0) target = $region37
    $region36: #{tpu_custom_call.1} parent=1 // pred_region
      %s192 = ssub.s32 256, 256
      %193 = vsyncadd [#allocation5], %s192
      %s194 = sshll.u32 [#allocation8], 4
      %s195 = int_to_ptr.vmem [resolvable:$true] %s194
      %200 = dma.vmem_to_hbm [thread:$0]  %s195, 256, %s3, [#allocation5], 128, 128, 8
    $region37: #{tpu_custom_call.1} parent=1 // pred_fallthru
      _
    // Predicated region
    $region38: #{tpu_custom_call.1} parent=1 // pred_check
      _
    $region39: #{tpu_custom_call.1} parent=1 // pred_check_branch
      %202 = sbr.rel (0) target = $region41
    $region40: #{tpu_custom_call.1} parent=1 // pred_region
      %203 = dma.done [#allocation5], 256
    $region41: #{tpu_custom_call.1} parent=1 // pred_fallthru
      _
    %204 = vsyncpa [#allocation4], 1
    %205 = vsyncpa [#allocation7], 1
    %206 = vsyncpa [#allocation5], 1

</llo_original>
